<compile_context>
chip_gen: v7x
topology: tpu7x:2x2x1
jax: 0.10.0
libtpu: 0.0.40
codegen_flags: <defaults>
</compile_context>

<pallas_src>
import jax
import jax.numpy as jnp
from jax import lax
from jax.experimental import pallas as pl
from jax.experimental.pallas import tpu as pltpu

D_PAD = 128   # lane-dense feature dim (>= n_features)
K_PAD = 128   # lane-dense class dim   (>= n_classes)


# ---------------------------------------------------------------------------
# Fused kernel: backbone (support+query) + prototypes + logits
# ---------------------------------------------------------------------------
def make_protonet_kernel(n_support: int, n_classes_pad: int):
    def kernel(x_ref, w1_ref, b1_ref, w2_ref, b2_ref, tgt_ref,
               emb_ref, proto_ref, logits_ref):
        # x_ref: (N_total, C*S). Mean-pool is already folded into w1_ref,
        # so the whole backbone front end is one MXU matmul.
        x = x_ref[...]
        h = jnp.dot(x, w1_ref[...],
                    preferred_element_type=jnp.float32) + b1_ref[...]   # (N, H)
        h = jnp.maximum(h, 0.0)                                         # ReLU (VPU, f32)
        emb = jnp.dot(h, w2_ref[...],
                      preferred_element_type=jnp.float32) + b2_ref[...]  # (N, D_PAD)
        emb_ref[...] = emb                                # lane-dense (128) store

        # static split into support / query embeddings (kept in vregs/VMEM)
        s_emb = emb[:n_support, :]                        # (Ns, D_PAD)
        q_emb = emb[n_support:, :]                        # (Q,  D_PAD)

        # one-hot class membership built on the VPU from the int32 targets
        tgt = tgt_ref[...]                                               # (1, Ns)
        class_ids = lax.broadcasted_iota(jnp.int32,
                                         (n_classes_pad, n_support), 0)  # (K_PAD, Ns)
        oh = (tgt == class_ids).astype(jnp.float32)                      # (K_PAD, Ns)
        counts = jnp.sum(oh, axis=1, keepdims=True)                      # (K_PAD, 1)
        inv = 1.0 / jnp.maximum(counts, 1.0)              # guard empty/padded classes

        # prototypes = per-class mean of support embeddings (one-hot matmul, MXU)
        proto = jnp.dot(oh, s_emb,
                        preferred_element_type=jnp.float32) * inv        # (K_PAD, D_PAD)
        proto_ref[...] = proto

        # squared Euclidean distance: ||q||^2 + ||p||^2 - 2 q.p
        # (padded feature columns are exactly zero, so they contribute nothing)
        q2 = jnp.sum(q_emb * q_emb, axis=1, keepdims=True)               # (Q, 1)
        p2 = jnp.sum(proto * proto, axis=1)[None, :]                     # (1, K_PAD)
        cross = lax.dot_general(q_emb, proto,
                                dimension_numbers=(((1,), (1,)), ((), ())),
                                preferred_element_type=jnp.float32)      # (Q, K_PAD)
        d2 = jnp.maximum(q2 + p2 - 2.0 * cross, 0.0)
        logits_ref[...] = -d2
    return kernel


# ---------------------------------------------------------------------------
# PrototypicalNet forward (wrapper = parameter/layout glue only)
# ---------------------------------------------------------------------------
def prototypical_net_forward(support, query, params):
    w1, b1, w2, b2 = params

    s_audio = support["audio"]
    q_audio = query["audio"]
    ns, c, s_len = s_audio.shape
    nq = q_audio.shape[0]
    d = w2.shape[1]
    k = support["classlist"].shape[0]

    # fold the 1/S mean-pool into the first-layer weight:
    #   mean_s(x) @ w1  ==  reshape(x, (N, C*S)) @ repeat(w1/S, S, axis=0)
    w1_big = jnp.repeat(w1 / s_len, s_len, axis=0)                 # (C*S, H)
    # zero-pad the feature dim to a lane-dense 128
    w2_pad = jnp.pad(w2, ((0, 0), (0, D_PAD - d)))
    b2_pad = jnp.pad(b2, ((0, 0), (0, D_PAD - d)))

    # one backbone pass over support + query (single concatenated batch)
    x_all = jnp.concatenate([s_audio, q_audio], axis=0).reshape(ns + nq, c * s_len)
    tgt = support["target"].astype(jnp.int32).reshape(1, ns)

    kernel = make_protonet_kernel(ns, K_PAD)
    emb_pad, proto_pad, logits_pad = pl.pallas_call(
        kernel,
        out_shape=(
            jax.ShapeDtypeStruct((ns + nq, D_PAD), jnp.float32),   # embeddings
            jax.ShapeDtypeStruct((K_PAD, D_PAD), jnp.float32),     # prototypes
            jax.ShapeDtypeStruct((nq, K_PAD), jnp.float32),        # logits
        ),
        in_specs=[pl.BlockSpec(memory_space=pltpu.MemorySpace.VMEM)] * 6,
        out_specs=(
            pl.BlockSpec(memory_space=pltpu.MemorySpace.VMEM),
            pl.BlockSpec(memory_space=pltpu.MemorySpace.VMEM),
            pl.BlockSpec(memory_space=pltpu.MemorySpace.VMEM),
        ),
    )(x_all, w1_big, b1, w2_pad, b2_pad, tgt)

    # side-effect updates mirroring the PyTorch module (strip lane padding)
    support["embeddings"] = emb_pad[:ns, :d]
    query["embeddings"] = emb_pad[ns:, :d]
    support["prototypes"] = proto_pad[:k, :d]
    return logits_pad[:, :k]


# ---------------------------------------------------------------------------
# Pure-JAX reference (for correctness check)
# ---------------------------------------------------------------------------
def reference_forward(support, query, params):
    w1, b1, w2, b2 = params

    def bb(x):
        pooled = jnp.mean(x, axis=2)
        h = jnp.maximum(pooled @ w1 + b1, 0.0)
        return h @ w2 + b2

    s_emb = bb(support["audio"])
    q_emb = bb(query["audio"])
    protos = []
    for idx in range(support["classlist"].shape[0]):
        mask = (support["target"] == idx).astype(jnp.float32)[:, None]
        protos.append(jnp.sum(s_emb * mask, axis=0) / jnp.sum(mask))
    protos = jnp.stack(protos)
    d2 = jnp.sum((q_emb[:, None, :] - protos[None, :, :]) ** 2, axis=-1)
    return -d2


# ---------------------------------------------------------------------------
if __name__ == "__main__":
    key = jax.random.PRNGKey(0)

    # episode sizes
    n_classes = 4      # K
    n_shot = 2         # support examples per class
    n_support = n_classes * n_shot
    n_query = 8
    n_channels = 4
    n_samples = 64
    hidden = 32
    n_features = 16

    k_s, k_q, k_w1, k_b1, k_w2, k_b2 = jax.random.split(key, 6)

    support_audio = jax.random.normal(k_s, (n_support, n_channels, n_samples),
                                      dtype=jnp.float32)
    query_audio = jax.random.normal(k_q, (n_query, n_channels, n_samples),
                                    dtype=jnp.float32)

    classlist = jnp.arange(n_classes, dtype=jnp.int32)
    target = jnp.repeat(jnp.arange(n_classes, dtype=jnp.int32), n_shot)

    # deterministic backbone parameters (biases kept 2-D for clean VMEM layout)
    w1 = 0.1 * jax.random.normal(k_w1, (n_channels, hidden), dtype=jnp.float32)
    b1 = 0.1 * jax.random.normal(k_b1, (1, hidden), dtype=jnp.float32)
    w2 = 0.1 * jax.random.normal(k_w2, (hidden, n_features), dtype=jnp.float32)
    b2 = 0.1 * jax.random.normal(k_b2, (1, n_features), dtype=jnp.float32)
    params = (w1, b1, w2, b2)

    support = {"audio": support_audio, "target": target, "classlist": classlist}
    query = {"audio": query_audio}

    logits = prototypical_net_forward(support, query, params)
    logits = jax.block_until_ready(logits)

    ref = reference_forward(support, query, params)
    assert logits.shape == (n_query, n_classes)
    assert support["embeddings"].shape == (n_support, n_features)
    assert support["prototypes"].shape == (n_classes, n_features)
    assert query["embeddings"].shape == (n_query, n_features)
    assert jnp.allclose(logits, ref, atol=1e-3, rtol=1e-3), "mismatch vs reference"

    print("KERNEL_OK")
</pallas_src>

<mosaic_0001>
module attributes {stable_mosaic.version = 11 : i64} {
  func.func @kernel(%arg0: memref<16x256xf32, #tpu.memory_space<vmem>>, %arg1: memref<256x32xf32, #tpu.memory_space<vmem>>, %arg2: memref<1x32xf32, #tpu.memory_space<vmem>>, %arg3: memref<32x128xf32, #tpu.memory_space<vmem>>, %arg4: memref<1x128xf32, #tpu.memory_space<vmem>>, %arg5: memref<1x8xi32, #tpu.memory_space<vmem>>, %arg6: memref<16x128xf32, #tpu.memory_space<vmem>>, %arg7: memref<128x128xf32, #tpu.memory_space<vmem>>, %arg8: memref<8x128xf32, #tpu.memory_space<vmem>>) attributes {dimension_semantics = [], scalar_prefetch = 0 : i64, scratch_operands = 0 : i64, tpu.core_type = #tpu.core_type<tc>} {
    %c0 = arith.constant 0 : index
    %c0_0 = arith.constant 0 : index
    %0 = vector.load %arg0[%c0, %c0_0] : memref<16x256xf32, #tpu.memory_space<vmem>>, vector<16x256xf32>
    %c0_1 = arith.constant 0 : index
    %c0_2 = arith.constant 0 : index
    %1 = vector.load %arg1[%c0_1, %c0_2] : memref<256x32xf32, #tpu.memory_space<vmem>>, vector<256x32xf32>
    %cst = arith.constant dense<0.000000e+00> : vector<16x32xf32>
    %2 = tpu.matmul %0, %1, %cst {dimension_numbers = #tpu.dot_dimension_numbers<[1], [0], [0], [1], [0, 0, 1, 1], [], []>} : vector<16x256xf32>, vector<256x32xf32>, vector<16x32xf32> -> vector<16x32xf32>
    %c0_3 = arith.constant 0 : index
    %c0_4 = arith.constant 0 : index
    %3 = vector.load %arg2[%c0_3, %c0_4] : memref<1x32xf32, #tpu.memory_space<vmem>>, vector<1x32xf32>
    %4 = vector.broadcast %3 : vector<1x32xf32> to vector<16x32xf32>
    %5 = arith.addf %2, %4 : vector<16x32xf32>
    %cst_5 = arith.constant 0.000000e+00 : f32
    %6 = vector.broadcast %cst_5 : f32 to vector<16x32xf32>
    %7 = arith.maximumf %5, %6 : vector<16x32xf32>
    %c0_6 = arith.constant 0 : index
    %c0_7 = arith.constant 0 : index
    %8 = vector.load %arg3[%c0_6, %c0_7] : memref<32x128xf32, #tpu.memory_space<vmem>>, vector<32x128xf32>
    %cst_8 = arith.constant dense<0.000000e+00> : vector<16x128xf32>
    %9 = tpu.matmul %7, %8, %cst_8 {dimension_numbers = #tpu.dot_dimension_numbers<[1], [0], [0], [1], [0, 0, 1, 1], [], []>} : vector<16x32xf32>, vector<32x128xf32>, vector<16x128xf32> -> vector<16x128xf32>
    %c0_9 = arith.constant 0 : index
    %c0_10 = arith.constant 0 : index
    %10 = vector.load %arg4[%c0_9, %c0_10] : memref<1x128xf32, #tpu.memory_space<vmem>>, vector<1x128xf32>
    %11 = vector.broadcast %10 : vector<1x128xf32> to vector<16x128xf32>
    %12 = arith.addf %9, %11 : vector<16x128xf32>
    %c0_11 = arith.constant 0 : index
    %c0_12 = arith.constant 0 : index
    %13 = vector.load %arg6[%c0_11, %c0_12] : memref<16x128xf32, #tpu.memory_space<vmem>>, vector<16x128xf32>
    tpu.vector_store %arg6[%c0_11, %c0_12], %12 {strides = array<i32>} : memref<16x128xf32, #tpu.memory_space<vmem>>, vector<16x128xf32>,
    %14 = vector.extract_strided_slice %12 {offsets = [0, 0], sizes = [8, 128], strides = [1, 1]} : vector<16x128xf32> to vector<8x128xf32>
    %15 = vector.extract_strided_slice %12 {offsets = [8, 0], sizes = [8, 128], strides = [1, 1]} : vector<16x128xf32> to vector<8x128xf32>
    %c0_13 = arith.constant 0 : index
    %c0_14 = arith.constant 0 : index
    %16 = vector.load %arg5[%c0_13, %c0_14] : memref<1x8xi32, #tpu.memory_space<vmem>>, vector<1x8xi32>
    %17 = tpu.iota {dimensions = array<i32: 0>} : vector<128x8xi32>
    %18 = vector.broadcast %16 : vector<1x8xi32> to vector<128x8xi32>
    %19 = arith.cmpi eq, %18, %17 : vector<128x8xi32>
    %20 = arith.extui %19 : vector<128x8xi1> to vector<128x8xi32>
    %21 = arith.sitofp %20 : vector<128x8xi32> to vector<128x8xf32>
    %cst_15 = arith.constant dense<0.000000e+00> : vector<128xf32>
    %22 = vector.multi_reduction <add>, %21, %cst_15 [1] : vector<128x8xf32> to vector<128xf32>
    %23 = vector.shape_cast %22 : vector<128xf32> to vector<128x1xf32>
    %cst_16 = arith.constant 1.000000e+00 : f32
    %24 = vector.broadcast %cst_16 : f32 to vector<128x1xf32>
    %25 = arith.maximumf %23, %24 : vector<128x1xf32>
    %cst_17 = arith.constant 1.000000e+00 : f32
    %26 = vector.broadcast %cst_17 : f32 to vector<128x1xf32>
    %27 = arith.divf %26, %25 : vector<128x1xf32>
    %cst_18 = arith.constant dense<0.000000e+00> : vector<128x128xf32>
    %28 = tpu.matmul %21, %14, %cst_18 {dimension_numbers = #tpu.dot_dimension_numbers<[1], [0], [0], [1], [0, 0, 1, 1], [], []>} : vector<128x8xf32>, vector<8x128xf32>, vector<128x128xf32> -> vector<128x128xf32>
    %29 = vector.broadcast %27 : vector<128x1xf32> to vector<128x128xf32>
    %30 = arith.mulf %28, %29 : vector<128x128xf32>
    %c0_19 = arith.constant 0 : index
    %c0_20 = arith.constant 0 : index
    %31 = vector.load %arg7[%c0_19, %c0_20] : memref<128x128xf32, #tpu.memory_space<vmem>>, vector<128x128xf32>
    tpu.vector_store %arg7[%c0_19, %c0_20], %30 {strides = array<i32>} : memref<128x128xf32, #tpu.memory_space<vmem>>, vector<128x128xf32>,
    %32 = arith.mulf %15, %15 : vector<8x128xf32>
    %cst_21 = arith.constant dense<0.000000e+00> : vector<8xf32>
    %33 = vector.multi_reduction <add>, %32, %cst_21 [1] : vector<8x128xf32> to vector<8xf32>
    %34 = vector.shape_cast %33 : vector<8xf32> to vector<8x1xf32>
    %35 = arith.mulf %30, %30 : vector<128x128xf32>
    %cst_22 = arith.constant dense<0.000000e+00> : vector<128xf32>
    %36 = vector.multi_reduction <add>, %35, %cst_22 [1] : vector<128x128xf32> to vector<128xf32>
    %37 = vector.shape_cast %36 : vector<128xf32> to vector<1x128xf32>
    %cst_23 = arith.constant dense<0.000000e+00> : vector<8x128xf32>
    %38 = tpu.matmul %15, %30, %cst_23 {dimension_numbers = #tpu.dot_dimension_numbers<[1], [1], [0], [0], [0, 0, 1, 0], [], []>} : vector<8x128xf32>, vector<128x128xf32>, vector<8x128xf32> -> vector<8x128xf32>
    %39 = vector.broadcast %34 : vector<8x1xf32> to vector<8x128xf32>
    %40 = vector.broadcast %37 : vector<1x128xf32> to vector<8x128xf32>
    %41 = arith.addf %39, %40 : vector<8x128xf32>
    %cst_24 = arith.constant 2.000000e+00 : f32
    %42 = vector.broadcast %cst_24 : f32 to vector<8x128xf32>
    %43 = arith.mulf %42, %38 : vector<8x128xf32>
    %44 = arith.subf %41, %43 : vector<8x128xf32>
    %cst_25 = arith.constant 0.000000e+00 : f32
    %45 = vector.broadcast %cst_25 : f32 to vector<8x128xf32>
    %46 = arith.maximumf %44, %45 : vector<8x128xf32>
    %cst_26 = arith.constant 0.000000e+00 : f32
    %47 = vector.broadcast %cst_26 : f32 to vector<8x128xf32>
    %48 = arith.subf %47, %46 : vector<8x128xf32>
    %c0_27 = arith.constant 0 : index
    %c0_28 = arith.constant 0 : index
    %49 = vector.load %arg8[%c0_27, %c0_28] : memref<8x128xf32, #tpu.memory_space<vmem>>, vector<8x128xf32>
    tpu.vector_store %arg8[%c0_27, %c0_28], %48 {strides = array<i32>} : memref<8x128xf32, #tpu.memory_space<vmem>>, vector<8x128xf32>,
    return
  }
}

</mosaic_0001>

<llo_original>
// kernel: tpu_custom_call.1
$region0: #{tpu_custom_call.1}
  #allocation0 [shape = 'u32[]', space=smem, size = 0x4, offset = 0x4, fixed_abs, tag = 'smem constant byte address 0x4 - core index']
  #allocation1 [shape = 'u32[144,128]{1,0:T(1,128)}', space=vmem, size = 0x12000, scoped, tag = 'internal scratch']
  %s0 = inlined_call_operand.vmem [shape: f32[16,256], index: 0, kind: input, shape index: {}]
  %s1 = inlined_call_operand.vmem [shape: f32[256,32], index: 1, kind: input, shape index: {}]
  %s2 = inlined_call_operand.vmem [shape: f32[1,32], index: 2, kind: input, shape index: {}]
  %s3 = inlined_call_operand.vmem [shape: f32[32,128], index: 3, kind: input, shape index: {}]
  %s4 = inlined_call_operand.vmem [shape: f32[1,128], index: 4, kind: input, shape index: {}]
  %s5 = inlined_call_operand.vmem [shape: s32[1,8], index: 5, kind: input, shape index: {}]
  %s6 = inlined_call_operand.hbm [shape: f32[16,128], index: 6, kind: output, shape index: {0}]
  %s7 = inlined_call_operand.hbm [shape: f32[128,128], index: 7, kind: output, shape index: {1}]
  %s8 = inlined_call_operand.hbm [shape: f32[8,128], index: 8, kind: output, shape index: {2}]
  %9 = xla_tuple %s6, %s7, %s8
  %s10 = sld [smem:[#allocation0]]
  $region50: #{tpu_custom_call.1} parent=0
    _
  %s12 = ssub.s32 1, %s10
  %s13 = scalar_select 0, %s12, %s10
  $region1: #{tpu_custom_call.1} parent=0
    #allocation2 [shape = 'u8[8192]{0}', space=vmem, size = 0x2000, scoped, tag = 'output window, operand 0, single buffered']
    #allocation3 [shape = 's32[1]{0}', space=sflag, size = 0x4, scoped, tag = 'scoped memory for tpu_custom_call.1']
    #allocation4 [shape = 'u8[65536]{0}', space=vmem, size = 0x10000, scoped, tag = 'output window, operand 1, single buffered']
    #allocation5 [shape = 's32[1]{0}', space=sflag, size = 0x4, scoped, tag = 'scoped memory for tpu_custom_call.1']
    #allocation6 [shape = 'u8[4096]{0}', space=vmem, size = 0x1000, scoped, tag = 'output window, operand 2, single buffered']
    %14 = vsyncpa [#allocation3], 0
    %15 = vsyncpa [#allocation5], 0
    // Predicated region
    $region2: #{tpu_custom_call.1} parent=1 // pred_check
      _
    $region3: #{tpu_custom_call.1} parent=1 // pred_check_branch
      %17 = sbr.rel (0) target = $region5
    $region4: #{tpu_custom_call.1} parent=1 // pred_region
      _
    $region5: #{tpu_custom_call.1} parent=1 // pred_fallthru
      _
    // Predicated region
    $region6: #{tpu_custom_call.1} parent=1 // pred_check
      _
    $region7: #{tpu_custom_call.1} parent=1 // pred_check_branch
      %19 = sbr.rel (0) target = $region9
    $region8: #{tpu_custom_call.1} parent=1 // pred_region
      _
    $region9: #{tpu_custom_call.1} parent=1 // pred_fallthru
      _
    // Predicated region
    $region10: #{tpu_custom_call.1} parent=1 // pred_check
      _
    $region11: #{tpu_custom_call.1} parent=1 // pred_check_branch
      %21 = sbr.rel (0) target = $region13
    $region12: #{tpu_custom_call.1} parent=1 // pred_region
      _
    $region13: #{tpu_custom_call.1} parent=1 // pred_fallthru
      _
    // Predicated region
    $region14: #{tpu_custom_call.1} parent=1 // pred_check
      _
    $region15: #{tpu_custom_call.1} parent=1 // pred_check_branch
      %23 = sbr.rel (0) target = $region17
    $region16: #{tpu_custom_call.1} parent=1 // pred_region
      _
    $region17: #{tpu_custom_call.1} parent=1 // pred_fallthru
      _
    // Predicated region
    $region18: #{tpu_custom_call.1} parent=1 // pred_check
      _
    $region19: #{tpu_custom_call.1} parent=1 // pred_check_branch
      %25 = sbr.rel (0) target = $region21
    $region20: #{tpu_custom_call.1} parent=1 // pred_region
      _
    $region21: #{tpu_custom_call.1} parent=1 // pred_fallthru
      _
    // Predicated region
    $region22: #{tpu_custom_call.1} parent=1 // pred_check
      _
    $region23: #{tpu_custom_call.1} parent=1 // pred_check_branch
      %27 = sbr.rel (0) target = $region25
    $region24: #{tpu_custom_call.1} parent=1 // pred_region
      _
    $region25: #{tpu_custom_call.1} parent=1 // pred_fallthru
      _
    %v28 = vld [vmem:[%s0] sm:$0xff]
    %v29 = vld [vmem:[%s0 + $0x8] sm:$0xff]
    %v30 = vld [vmem:[%s0 + $0x10] sm:$0xff]
    %v31 = vld [vmem:[%s0 + $0x18] sm:$0xff]
    %v32 = vld [vmem:[%s1] sm:$0xff]
    %v33 = vld [vmem:[%s1 + $0x8] sm:$0xff]
    %v34 = vld [vmem:[%s1 + $0x10] sm:$0xff]
    %v35 = vld [vmem:[%s1 + $0x18] sm:$0xff]
    %v36 = vld [vmem:[%s1 + $0x20] sm:$0xff]
    %v37 = vld [vmem:[%s1 + $0x28] sm:$0xff]
    %v38 = vld [vmem:[%s1 + $0x30] sm:$0xff]
    %v39 = vld [vmem:[%s1 + $0x38] sm:$0xff]
    %v40 = vld [vmem:[%s1 + $0x40] sm:$0xff]
    %v41 = vld [vmem:[%s1 + $0x48] sm:$0xff]
    %v42 = vld [vmem:[%s1 + $0x50] sm:$0xff]
    %v43 = vld [vmem:[%s1 + $0x58] sm:$0xff]
    %v44 = vld [vmem:[%s1 + $0x60] sm:$0xff]
    %v45 = vld [vmem:[%s1 + $0x68] sm:$0xff]
    %v46 = vld [vmem:[%s1 + $0x70] sm:$0xff]
    %v47 = vld [vmem:[%s1 + $0x78] sm:$0xff]
    %v48 = vld [vmem:[%s1 + $0x80] sm:$0xff]
    %v49 = vld [vmem:[%s1 + $0x88] sm:$0xff]
    %v50 = vld [vmem:[%s1 + $0x90] sm:$0xff]
    %v51 = vld [vmem:[%s1 + $0x98] sm:$0xff]
    %v52 = vld [vmem:[%s1 + $0xa0] sm:$0xff]
    %v53 = vld [vmem:[%s1 + $0xa8] sm:$0xff]
    %v54 = vld [vmem:[%s1 + $0xb0] sm:$0xff]
    %v55 = vld [vmem:[%s1 + $0xb8] sm:$0xff]
    %v56 = vld [vmem:[%s1 + $0xc0] sm:$0xff]
    %v57 = vld [vmem:[%s1 + $0xc8] sm:$0xff]
    %v58 = vld [vmem:[%s1 + $0xd0] sm:$0xff]
    %v59 = vld [vmem:[%s1 + $0xd8] sm:$0xff]
    %v60 = vld [vmem:[%s1 + $0xe0] sm:$0xff]
    %v61 = vld [vmem:[%s1 + $0xe8] sm:$0xff]
    %v62 = vld [vmem:[%s1 + $0xf0] sm:$0xff]
    %v63 = vld [vmem:[%s1 + $0xf8] sm:$0xff]
    %v64 = vld [vmem:[%s2] sm:$0x1]
    %v66 = vlaneseq
    %v67 = vshrl.u32 %v66, 7
    %v68 = vsub.s32 0, %v67
    %v69 = vrot.slane %v64, %v68
    %71 = vmatprep.subr.mxu0 0.0
    %72 = vmatpush1.msra.mxu0 %v32
    %73 = vmatprep.subr.mxu0 0.0
    %74 = vmatpush1.msra.mxu0 %v33
    %75 = vmatprep.subr.mxu0 0.0
    %76 = vmatpush1.msra.mxu0 %v34
    %77 = vmatprep.subr.mxu0 0.0
    %78 = vmatpush1.msra.mxu0 %v35
    %79 = vmatprep.subr.mxu0 0.0
    %80 = vmatpush1.msra.mxu0 %v36
    %81 = vmatprep.subr.mxu0 0.0
    %82 = vmatpush1.msra.mxu0 %v37
    %83 = vmatprep.subr.mxu0 0.0
    %84 = vmatpush1.msra.mxu0 %v38
    %85 = vmatprep.subr.mxu0 0.0
    %86 = vmatpush1.msra.mxu0 %v39
    %87 = vmatprep.subr.mxu0 0.0
    %88 = vmatpush1.msra.mxu0 %v40
    %89 = vmatprep.subr.mxu0 0.0
    %90 = vmatpush1.msra.mxu0 %v41
    %91 = vmatprep.subr.mxu0 0.0
    %92 = vmatpush1.msra.mxu0 %v42
    %93 = vmatprep.subr.mxu0 0.0
    %94 = vmatpush1.msra.mxu0 %v43
    %95 = vmatprep.subr.mxu0 0.0
    %96 = vmatpush1.msra.mxu0 %v44
    %97 = vmatprep.subr.mxu0 0.0
    %98 = vmatpush1.msra.mxu0 %v45
    %99 = vmatprep.subr.mxu0 0.0
    %100 = vmatpush1.msra.mxu0 %v46
    %101 = vmatprep.subr.mxu0 0.0
    %102 = vmatpush1.msra.mxu0 %v47
    %103 = vmatprep.subr.mxu0 0.0
    %104 = vmatpush1.msra.mxu0 %v48
    %105 = vmatprep.subr.mxu0 0.0
    %106 = vmatpush1.msra.mxu0 %v49
    %107 = vmatprep.subr.mxu0 0.0
    %108 = vmatpush1.msra.mxu0 %v50
    %109 = vmatprep.subr.mxu0 0.0
    %110 = vmatpush1.msra.mxu0 %v51
    %111 = vmatprep.subr.mxu0 0.0
    %112 = vmatpush1.msra.mxu0 %v52
    %113 = vmatprep.subr.mxu0 0.0
    %114 = vmatpush1.msra.mxu0 %v53
    %115 = vmatprep.subr.mxu0 0.0
    %116 = vmatpush1.msra.mxu0 %v54
    %117 = vmatprep.subr.mxu0 0.0
    %118 = vmatpush1.msra.mxu0 %v55
    %119 = vmatprep.subr.mxu0 0.0
    %120 = vmatpush1.msra.mxu0 %v56
    %121 = vmatprep.subr.mxu0 0.0
    %122 = vmatpush1.msra.mxu0 %v57
    %123 = vmatprep.subr.mxu0 0.0
    %124 = vmatpush1.msra.mxu0 %v58
    %125 = vmatprep.subr.mxu0 0.0
    %126 = vmatpush1.msra.mxu0 %v59
    %127 = vmatprep.subr.mxu0 0.0
    %128 = vmatpush1.msra.mxu0 %v60
    %129 = vmatprep.subr.mxu0 0.0
    %130 = vmatpush1.msra.mxu0 %v61
    %131 = vmatprep.subr.mxu0 0.0
    %132 = vmatpush1.msra.mxu0 %v62
    %133 = vmatprep.subr.mxu0 0.0
    %134 = vmatpush1.msra.mxu0 %v63
    %135 = vmatprep.mubr.f32.mxu0 %v29
    %136 = vmatmul.mubr.f32.gmra.mrb[0].mxu0 %v28
    %v137 = vpop.f32.mrb[0].mxu0
    %v138 = vadd.f32 %v69, %v137
    %v139 = vpop.f32.mrb[0].mxu0
    %140 = vmatprep.mubr.f32.mxu0 %v31
    %141 = vmatmul.mubr.f32.gmra.mrb[0].mxu0 %v30
    %v142 = vpop.f32.mrb[0].mxu0
    %v143 = vadd.f32 %v69, %v142
    %v144 = vpop.f32.mrb[0].mxu0
    %145 = vdwg.mxu0
    %v146 = vmax.f32 %v138, 0.0
    %v147 = vmax.f32 %v143, 0.0
    %v148 = vld [vmem:[%s3] sm:$0xff]
    %v149 = vld [vmem:[%s3 + $0x8] sm:$0xff]
    %v150 = vld [vmem:[%s3 + $0x10] sm:$0xff]
    %v151 = vld [vmem:[%s3 + $0x18] sm:$0xff]
    %v152 = vld [vmem:[%s4] sm:$0x1]
    %v154 = vlaneseq
    %v155 = vshrl.u32 %v154, 7
    %v156 = vsub.s32 0, %v155
    %v157 = vrot.slane %v152, %v156
    %vm159 = vcmask 261120
    %v161 = vsel %vm159, %v146, 0
    %v164 = vsel %vm159, %v147, 0
    %166 = vmatprep.subr.mxu0 0.0
    %167 = vmatpush1.msra.mxu0 %v148
    %168 = vmatprep.subr.mxu0 0.0
    %169 = vmatpush1.msra.mxu0 %v149
    %170 = vmatprep.subr.mxu0 0.0
    %171 = vmatpush1.msra.mxu0 %v150
    %172 = vmatprep.subr.mxu0 0.0
    %173 = vmatpush1.msra.mxu0 %v151
    %174 = vmatprep.subr.mxu0 0.0
    %175 = vmatpush1.msra.mxu0 0.0
    %176 = vmatprep.subr.mxu0 0.0
    %177 = vmatpush1.msra.mxu0 0.0
    %178 = vmatprep.subr.mxu0 0.0
    %179 = vmatpush1.msra.mxu0 0.0
    %180 = vmatprep.subr.mxu0 0.0
    %181 = vmatpush1.msra.mxu0 0.0
    %182 = vmatprep.subr.mxu0 0.0
    %183 = vmatpush1.msra.mxu0 0.0
    %184 = vmatprep.subr.mxu0 0.0
    %185 = vmatpush1.msra.mxu0 0.0
    %186 = vmatprep.subr.mxu0 0.0
    %187 = vmatpush1.msra.mxu0 0.0
    %188 = vmatprep.subr.mxu0 0.0
    %189 = vmatpush1.msra.mxu0 0.0
    %190 = vmatprep.subr.mxu0 0.0
    %191 = vmatpush1.msra.mxu0 0.0
    %192 = vmatprep.subr.mxu0 0.0
    %193 = vmatpush1.msra.mxu0 0.0
    %194 = vmatprep.subr.mxu0 0.0
    %195 = vmatpush1.msra.mxu0 0.0
    %196 = vmatprep.subr.mxu0 0.0
    %197 = vmatpush1.msra.mxu0 0.0
    %198 = vmatprep.subr.mxu0 0.0
    %199 = vmatpush1.msra.mxu0 0.0
    %200 = vmatprep.subr.mxu0 0.0
    %201 = vmatpush1.msra.mxu0 0.0
    %202 = vmatprep.subr.mxu0 0.0
    %203 = vmatpush1.msra.mxu0 0.0
    %204 = vmatprep.subr.mxu0 0.0
    %205 = vmatpush1.msra.mxu0 0.0
    %206 = vmatprep.subr.mxu0 0.0
    %207 = vmatpush1.msra.mxu0 0.0
    %208 = vmatprep.subr.mxu0 0.0
    %209 = vmatpush1.msra.mxu0 0.0
    %210 = vmatprep.subr.mxu0 0.0
    %211 = vmatpush1.msra.mxu0 0.0
    %212 = vmatprep.subr.mxu0 0.0
    %213 = vmatpush1.msra.mxu0 0.0
    %214 = vmatprep.subr.mxu0 0.0
    %215 = vmatpush1.msra.mxu0 0.0
    %216 = vmatprep.subr.mxu0 0.0
    %217 = vmatpush1.msra.mxu0 0.0
    %218 = vmatprep.subr.mxu0 0.0
    %219 = vmatpush1.msra.mxu0 0.0
    %220 = vmatprep.subr.mxu0 0.0
    %221 = vmatpush1.msra.mxu0 0.0
    %222 = vmatprep.subr.mxu0 0.0
    %223 = vmatpush1.msra.mxu0 0.0
    %224 = vmatprep.subr.mxu0 0.0
    %225 = vmatpush1.msra.mxu0 0.0
    %226 = vmatprep.subr.mxu0 0.0
    %227 = vmatpush1.msra.mxu0 0.0
    %228 = vmatprep.subr.mxu0 0.0
    %229 = vmatpush1.msra.mxu0 0.0
    %230 = vmatprep.mubr.f32.mxu0 0.0
    %231 = vmatmul.mubr.f32.gmra.mrb[0].mxu0 %v161
    %v232 = vpop.f32.mrb[0].mxu0
    %v233 = vadd.f32 %v157, %v232
    %v234 = vpop.f32.mrb[0].mxu0
    %235 = vmatprep.mubr.f32.mxu0 0.0
    %236 = vmatmul.mubr.f32.gmra.mrb[0].mxu0 %v164
    %v237 = vpop.f32.mrb[0].mxu0
    %v238 = vadd.f32 %v157, %v237
    %v239 = vpop.f32.mrb[0].mxu0
    %240 = vdwg.mxu0
    %241 = vst [vmem:[#allocation2] sm:$0xff] %v233
    %242 = vst [vmem:[#allocation2 + $0x8] sm:$0xff] %v238
    %v243 = vld [vmem:[%s5] sm:$0x1]
    %v244 = vlaneseq
    %v245 = vshrl.u32 %v244, 7
    %v246 = vadd.s32 %v245, 8
    %v247 = vadd.s32 %v245, 16
    %v248 = vadd.s32 %v245, 24
    %v249 = vadd.s32 %v245, 32
    %v250 = vadd.s32 %v245, 40
    %v251 = vadd.s32 %v245, 48
    %v252 = vadd.s32 %v245, 56
    %v253 = vadd.s32 %v245, 64
    %v254 = vadd.s32 %v245, 72
    %v255 = vadd.s32 %v245, 80
    %v256 = vadd.s32 %v245, 88
    %v257 = vadd.s32 %v245, 96
    %v258 = vadd.s32 %v245, 104
    %v259 = vadd.s32 %v245, 112
    %v260 = vadd.s32 %v245, 120
    %v261 = vlaneseq
    %v262 = vshrl.u32 %v261, 7
    %v263 = vsub.s32 0, %v262
    %v264 = vrot.slane %v243, %v263
    %vm265 = vcmp.eq.s32.totalorder %v264, %v245
    %vm266 = vcmp.eq.s32.totalorder %v264, %v246
    %vm267 = vcmp.eq.s32.totalorder %v264, %v247
    %vm268 = vcmp.eq.s32.totalorder %v264, %v248
    %vm269 = vcmp.eq.s32.totalorder %v264, %v249
    %vm270 = vcmp.eq.s32.totalorder %v264, %v250
    %vm271 = vcmp.eq.s32.totalorder %v264, %v251
    %vm272 = vcmp.eq.s32.totalorder %v264, %v252
    %vm273 = vcmp.eq.s32.totalorder %v264, %v253
    %vm274 = vcmp.eq.s32.totalorder %v264, %v254
    %vm275 = vcmp.eq.s32.totalorder %v264, %v255
    %vm276 = vcmp.eq.s32.totalorder %v264, %v256
    %vm277 = vcmp.eq.s32.totalorder %v264, %v257
    %vm278 = vcmp.eq.s32.totalorder %v264, %v258
    %vm279 = vcmp.eq.s32.totalorder %v264, %v259
    %vm280 = vcmp.eq.s32.totalorder %v264, %v260
    %v281 = vsel %vm265, 1, 0
    %v282 = vsel %vm266, 1, 0
    %v283 = vsel %vm267, 1, 0
    %v284 = vsel %vm268, 1, 0
    %v285 = vsel %vm269, 1, 0
    %v286 = vsel %vm270, 1, 0
    %v287 = vsel %vm271, 1, 0
    %v288 = vsel %vm272, 1, 0
    %v289 = vsel %vm273, 1, 0
    %v290 = vsel %vm274, 1, 0
    %v291 = vsel %vm275, 1, 0
    %v292 = vsel %vm276, 1, 0
    %v293 = vsel %vm277, 1, 0
    %v294 = vsel %vm278, 1, 0
    %v295 = vsel %vm279, 1, 0
    %v296 = vsel %vm280, 1, 0
    %v297 = vcvt.s32.f32 %v281
    %v298 = vcvt.s32.f32 %v282
    %v299 = vcvt.s32.f32 %v283
    %v300 = vcvt.s32.f32 %v284
    %v301 = vcvt.s32.f32 %v285
    %v302 = vcvt.s32.f32 %v286
    %v303 = vcvt.s32.f32 %v287
    %v304 = vcvt.s32.f32 %v288
    %v305 = vcvt.s32.f32 %v289
    %v306 = vcvt.s32.f32 %v290
    %v307 = vcvt.s32.f32 %v291
    %v308 = vcvt.s32.f32 %v292
    %v309 = vcvt.s32.f32 %v293
    %v310 = vcvt.s32.f32 %v294
    %v311 = vcvt.s32.f32 %v295
    %v312 = vcvt.s32.f32 %v296
    %vm313 = vcmask 64512
    %v314 = vsel %vm313, %v297, 0.0
    %315 = vadd.xlane.f32.xlu0 %v314
    %v316 = vpop.xlane.xlu0 %315
    %v317 = vsel %vm313, %v298, 0.0
    %318 = vadd.xlane.f32.xlu0 %v317
    %v319 = vpop.xlane.xlu0 %318
    %v320 = vsel %vm313, %v299, 0.0
    %321 = vadd.xlane.f32.xlu0 %v320
    %v322 = vpop.xlane.xlu0 %321
    %v323 = vsel %vm313, %v300, 0.0
    %324 = vadd.xlane.f32.xlu0 %v323
    %v325 = vpop.xlane.xlu0 %324
    %v326 = vsel %vm313, %v301, 0.0
    %327 = vadd.xlane.f32.xlu0 %v326
    %v328 = vpop.xlane.xlu0 %327
    %v329 = vsel %vm313, %v302, 0.0
    %330 = vadd.xlane.f32.xlu0 %v329
    %v331 = vpop.xlane.xlu0 %330
    %v332 = vsel %vm313, %v303, 0.0
    %333 = vadd.xlane.f32.xlu0 %v332
    %v334 = vpop.xlane.xlu0 %333
    %v335 = vsel %vm313, %v304, 0.0
    %336 = vadd.xlane.f32.xlu0 %v335
    %v337 = vpop.xlane.xlu0 %336
    %v338 = vsel %vm313, %v305, 0.0
    %339 = vadd.xlane.f32.xlu0 %v338
    %v340 = vpop.xlane.xlu0 %339
    %v341 = vsel %vm313, %v306, 0.0
    %342 = vadd.xlane.f32.xlu0 %v341
    %v343 = vpop.xlane.xlu0 %342
    %v344 = vsel %vm313, %v307, 0.0
    %345 = vadd.xlane.f32.xlu0 %v344
    %v346 = vpop.xlane.xlu0 %345
    %v347 = vsel %vm313, %v308, 0.0
    %348 = vadd.xlane.f32.xlu0 %v347
    %v349 = vpop.xlane.xlu0 %348
    %v350 = vsel %vm313, %v309, 0.0
    %351 = vadd.xlane.f32.xlu0 %v350
    %v352 = vpop.xlane.xlu0 %351
    %v353 = vsel %vm313, %v310, 0.0
    %354 = vadd.xlane.f32.xlu0 %v353
    %v355 = vpop.xlane.xlu0 %354
    %v356 = vsel %vm313, %v311, 0.0
    %357 = vadd.xlane.f32.xlu0 %v356
    %v358 = vpop.xlane.xlu0 %357
    %v359 = vsel %vm313, %v312, 0.0
    %360 = vadd.xlane.f32.xlu0 %v359
    %v361 = vpop.xlane.xlu0 %360
    %v362 = vmax.f32 %v316, 1.0
    %v363 = vmax.f32 %v319, 1.0
    %v364 = vmax.f32 %v322, 1.0
    %v365 = vmax.f32 %v325, 1.0
    %v366 = vmax.f32 %v328, 1.0
    %v367 = vmax.f32 %v331, 1.0
    %v368 = vmax.f32 %v334, 1.0
    %v369 = vmax.f32 %v337, 1.0
    %v370 = vmax.f32 %v340, 1.0
    %v371 = vmax.f32 %v343, 1.0
    %v372 = vmax.f32 %v346, 1.0
    %v373 = vmax.f32 %v349, 1.0
    %v374 = vmax.f32 %v352, 1.0
    %v375 = vmax.f32 %v355, 1.0
    %v376 = vmax.f32 %v358, 1.0
    %v377 = vmax.f32 %v361, 1.0
    %v378 = vrcp.pop %v362
    %v379 = vmul.f32 1.0, %v378
    %v380 = vrcp.pop %v363
    %v381 = vmul.f32 1.0, %v380
    %v382 = vrcp.pop %v364
    %v383 = vmul.f32 1.0, %v382
    %v384 = vrcp.pop %v365
    %v385 = vmul.f32 1.0, %v384
    %v386 = vrcp.pop %v366
    %v387 = vmul.f32 1.0, %v386
    %v388 = vrcp.pop %v367
    %v389 = vmul.f32 1.0, %v388
    %v390 = vrcp.pop %v368
    %v391 = vmul.f32 1.0, %v390
    %v392 = vrcp.pop %v369
    %v393 = vmul.f32 1.0, %v392
    %v394 = vrcp.pop %v370
    %v395 = vmul.f32 1.0, %v394
    %v396 = vrcp.pop %v371
    %v397 = vmul.f32 1.0, %v396
    %v398 = vrcp.pop %v372
    %v399 = vmul.f32 1.0, %v398
    %v400 = vrcp.pop %v373
    %v401 = vmul.f32 1.0, %v400
    %v402 = vrcp.pop %v374
    %v403 = vmul.f32 1.0, %v402
    %v404 = vrcp.pop %v375
    %v405 = vmul.f32 1.0, %v404
    %v406 = vrcp.pop %v376
    %v407 = vmul.f32 1.0, %v406
    %v408 = vrcp.pop %v377
    %v409 = vmul.f32 1.0, %v408
    %v411 = vsel %vm313, %v297, 0
    %v414 = vsel %vm313, %v298, 0
    %v417 = vsel %vm313, %v299, 0
    %v420 = vsel %vm313, %v300, 0
    %v423 = vsel %vm313, %v301, 0
    %v426 = vsel %vm313, %v302, 0
    %v429 = vsel %vm313, %v303, 0
    %v432 = vsel %vm313, %v304, 0
    %v435 = vsel %vm313, %v305, 0
    %v438 = vsel %vm313, %v306, 0
    %v441 = vsel %vm313, %v307, 0
    %v444 = vsel %vm313, %v308, 0
    %v447 = vsel %vm313, %v309, 0
    %v450 = vsel %vm313, %v310, 0
    %v453 = vsel %vm313, %v311, 0
    %v456 = vsel %vm313, %v312, 0
    %458 = vmatprep.subr.mxu0 0.0
    %459 = vmatpush1.msra.mxu0 %v233
    %460 = vmatprep.subr.mxu0 0.0
    %461 = vmatpush1.msra.mxu0 0.0
    %462 = vmatprep.subr.mxu0 0.0
    %463 = vmatpush1.msra.mxu0 0.0
    %464 = vmatprep.subr.mxu0 0.0
    %465 = vmatpush1.msra.mxu0 0.0
    %466 = vmatprep.subr.mxu0 0.0
    %467 = vmatpush1.msra.mxu0 0.0
    %468 = vmatprep.subr.mxu0 0.0
    %469 = vmatpush1.msra.mxu0 0.0
    %470 = vmatprep.subr.mxu0 0.0
    %471 = vmatpush1.msra.mxu0 0.0
    %472 = vmatprep.subr.mxu0 0.0
    %473 = vmatpush1.msra.mxu0 0.0
    %474 = vmatprep.subr.mxu0 0.0
    %475 = vmatpush1.msra.mxu0 0.0
    %476 = vmatprep.subr.mxu0 0.0
    %477 = vmatpush1.msra.mxu0 0.0
    %478 = vmatprep.subr.mxu0 0.0
    %479 = vmatpush1.msra.mxu0 0.0
    %480 = vmatprep.subr.mxu0 0.0
    %481 = vmatpush1.msra.mxu0 0.0
    %482 = vmatprep.subr.mxu0 0.0
    %483 = vmatpush1.msra.mxu0 0.0
    %484 = vmatprep.subr.mxu0 0.0
    %485 = vmatpush1.msra.mxu0 0.0
    %486 = vmatprep.subr.mxu0 0.0
    %487 = vmatpush1.msra.mxu0 0.0
    %488 = vmatprep.subr.mxu0 0.0
    %489 = vmatpush1.msra.mxu0 0.0
    %490 = vmatprep.subr.mxu0 0.0
    %491 = vmatpush1.msra.mxu0 0.0
    %492 = vmatprep.subr.mxu0 0.0
    %493 = vmatpush1.msra.mxu0 0.0
    %494 = vmatprep.subr.mxu0 0.0
    %495 = vmatpush1.msra.mxu0 0.0
    %496 = vmatprep.subr.mxu0 0.0
    %497 = vmatpush1.msra.mxu0 0.0
    %498 = vmatprep.subr.mxu0 0.0
    %499 = vmatpush1.msra.mxu0 0.0
    %500 = vmatprep.subr.mxu0 0.0
    %501 = vmatpush1.msra.mxu0 0.0
    %502 = vmatprep.subr.mxu0 0.0
    %503 = vmatpush1.msra.mxu0 0.0
    %504 = vmatprep.subr.mxu0 0.0
    %505 = vmatpush1.msra.mxu0 0.0
    %506 = vmatprep.subr.mxu0 0.0
    %507 = vmatpush1.msra.mxu0 0.0
    %508 = vmatprep.subr.mxu0 0.0
    %509 = vmatpush1.msra.mxu0 0.0
    %510 = vmatprep.subr.mxu0 0.0
    %511 = vmatpush1.msra.mxu0 0.0
    %512 = vmatprep.subr.mxu0 0.0
    %513 = vmatpush1.msra.mxu0 0.0
    %514 = vmatprep.subr.mxu0 0.0
    %515 = vmatpush1.msra.mxu0 0.0
    %516 = vmatprep.subr.mxu0 0.0
    %517 = vmatpush1.msra.mxu0 0.0
    %518 = vmatprep.subr.mxu0 0.0
    %519 = vmatpush1.msra.mxu0 0.0
    %520 = vmatprep.subr.mxu0 0.0
    %521 = vmatpush1.msra.mxu0 0.0
    %522 = vmatprep.mubr.f32.mxu0 0.0
    %523 = vmatmul.mubr.f32.gmra.mrb[0].mxu0 %v411
    %v524 = vpop.f32.mrb[0].mxu0
    %v525 = vadd.f32 0.0, %v524
    %v526 = vpop.f32.mrb[0].mxu0
    %527 = vmatprep.mubr.f32.mxu0 0.0
    %528 = vmatmul.mubr.f32.gmra.mrb[0].mxu0 %v414
    %v529 = vpop.f32.mrb[0].mxu0
    %v530 = vadd.f32 0.0, %v529
    %v531 = vpop.f32.mrb[0].mxu0
    %532 = vmatprep.mubr.f32.mxu0 0.0
    %533 = vmatmul.mubr.f32.gmra.mrb[0].mxu0 %v417
    %v534 = vpop.f32.mrb[0].mxu0
    %v535 = vadd.f32 0.0, %v534
    %v536 = vpop.f32.mrb[0].mxu0
    %537 = vmatprep.mubr.f32.mxu0 0.0
    %538 = vmatmul.mubr.f32.gmra.mrb[0].mxu0 %v420
    %v539 = vpop.f32.mrb[0].mxu0
    %v540 = vadd.f32 0.0, %v539
    %v541 = vpop.f32.mrb[0].mxu0
    %542 = vmatprep.mubr.f32.mxu0 0.0
    %543 = vmatmul.mubr.f32.gmra.mrb[0].mxu0 %v423
    %v544 = vpop.f32.mrb[0].mxu0
    %v545 = vadd.f32 0.0, %v544
    %v546 = vpop.f32.mrb[0].mxu0
    %547 = vmatprep.mubr.f32.mxu0 0.0
    %548 = vmatmul.mubr.f32.gmra.mrb[0].mxu0 %v426
    %v549 = vpop.f32.mrb[0].mxu0
    %v550 = vadd.f32 0.0, %v549
    %v551 = vpop.f32.mrb[0].mxu0
    %552 = vmatprep.mubr.f32.mxu0 0.0
    %553 = vmatmul.mubr.f32.gmra.mrb[0].mxu0 %v429
    %v554 = vpop.f32.mrb[0].mxu0
    %v555 = vadd.f32 0.0, %v554
    %v556 = vpop.f32.mrb[0].mxu0
    %557 = vmatprep.mubr.f32.mxu0 0.0
    %558 = vmatmul.mubr.f32.gmra.mrb[0].mxu0 %v432
    %v559 = vpop.f32.mrb[0].mxu0
    %v560 = vadd.f32 0.0, %v559
    %v561 = vpop.f32.mrb[0].mxu0
    %562 = vmatprep.mubr.f32.mxu0 0.0
    %563 = vmatmul.mubr.f32.gmra.mrb[0].mxu0 %v435
    %v564 = vpop.f32.mrb[0].mxu0
    %v565 = vadd.f32 0.0, %v564
    %v566 = vpop.f32.mrb[0].mxu0
    %567 = vmatprep.mubr.f32.mxu0 0.0
    %568 = vmatmul.mubr.f32.gmra.mrb[0].mxu0 %v438
    %v569 = vpop.f32.mrb[0].mxu0
    %v570 = vadd.f32 0.0, %v569
    %v571 = vpop.f32.mrb[0].mxu0
    %572 = vmatprep.mubr.f32.mxu0 0.0
    %573 = vmatmul.mubr.f32.gmra.mrb[0].mxu0 %v441
    %v574 = vpop.f32.mrb[0].mxu0
    %v575 = vadd.f32 0.0, %v574
    %v576 = vpop.f32.mrb[0].mxu0
    %577 = vmatprep.mubr.f32.mxu0 0.0
    %578 = vmatmul.mubr.f32.gmra.mrb[0].mxu0 %v444
    %v579 = vpop.f32.mrb[0].mxu0
    %v580 = vadd.f32 0.0, %v579
    %v581 = vpop.f32.mrb[0].mxu0
    %582 = vmatprep.mubr.f32.mxu0 0.0
    %583 = vmatmul.mubr.f32.gmra.mrb[0].mxu0 %v447
    %v584 = vpop.f32.mrb[0].mxu0
    %v585 = vadd.f32 0.0, %v584
    %v586 = vpop.f32.mrb[0].mxu0
    %587 = vmatprep.mubr.f32.mxu0 0.0
    %588 = vmatmul.mubr.f32.gmra.mrb[0].mxu0 %v450
    %v589 = vpop.f32.mrb[0].mxu0
    %v590 = vadd.f32 0.0, %v589
    %v591 = vpop.f32.mrb[0].mxu0
    %592 = vmatprep.mubr.f32.mxu0 0.0
    %593 = vmatmul.mubr.f32.gmra.mrb[0].mxu0 %v453
    %v594 = vpop.f32.mrb[0].mxu0
    %v595 = vadd.f32 0.0, %v594
    %v596 = vpop.f32.mrb[0].mxu0
    %597 = vmatprep.mubr.f32.mxu0 0.0
    %598 = vmatmul.mubr.f32.gmra.mrb[0].mxu0 %v456
    %v599 = vpop.f32.mrb[0].mxu0
    %v600 = vadd.f32 0.0, %v599
    %v601 = vpop.f32.mrb[0].mxu0
    %602 = vdwg.mxu0
    %v603 = vmul.f32 %v525, %v379
    %v604 = vmul.f32 %v530, %v381
    %v605 = vmul.f32 %v535, %v383
    %v606 = vmul.f32 %v540, %v385
    %v607 = vmul.f32 %v545, %v387
    %v608 = vmul.f32 %v550, %v389
    %v609 = vmul.f32 %v555, %v391
    %v610 = vmul.f32 %v560, %v393
    %v611 = vmul.f32 %v565, %v395
    %v612 = vmul.f32 %v570, %v397
    %v613 = vmul.f32 %v575, %v399
    %v614 = vmul.f32 %v580, %v401
    %v615 = vmul.f32 %v585, %v403
    %v616 = vmul.f32 %v590, %v405
    %v617 = vmul.f32 %v595, %v407
    %v618 = vmul.f32 %v600, %v409
    %619 = vst [vmem:[#allocation4] sm:$0xff] %v603
    %620 = vst [vmem:[#allocation4 + $0x8] sm:$0xff] %v604
    %621 = vst [vmem:[#allocation4 + $0x10] sm:$0xff] %v605
    %622 = vst [vmem:[#allocation4 + $0x18] sm:$0xff] %v606
    %623 = vst [vmem:[#allocation4 + $0x20] sm:$0xff] %v607
    %624 = vst [vmem:[#allocation4 + $0x28] sm:$0xff] %v608
    %625 = vst [vmem:[#allocation4 + $0x30] sm:$0xff] %v609
    %626 = vst [vmem:[#allocation4 + $0x38] sm:$0xff] %v610
    %627 = vst [vmem:[#allocation4 + $0x40] sm:$0xff] %v611
    %628 = vst [vmem:[#allocation4 + $0x48] sm:$0xff] %v612
    %629 = vst [vmem:[#allocation4 + $0x50] sm:$0xff] %v613
    %630 = vst [vmem:[#allocation4 + $0x58] sm:$0xff] %v614
    %631 = vst [vmem:[#allocation4 + $0x60] sm:$0xff] %v615
    %632 = vst [vmem:[#allocation4 + $0x68] sm:$0xff] %v616
    %633 = vst [vmem:[#allocation4 + $0x70] sm:$0xff] %v617
    %634 = vst [vmem:[#allocation4 + $0x78] sm:$0xff] %v618
    %v635 = vmul.f32 %v238, %v238
    %636 = vadd.xlane.f32.xlu0 %v635
    %v637 = vpop.xlane.xlu0 %636
    %v638 = vmul.f32 %v603, %v603
    %v639 = vmul.f32 %v604, %v604
    %v640 = vmul.f32 %v605, %v605
    %v641 = vmul.f32 %v606, %v606
    %v642 = vmul.f32 %v607, %v607
    %v643 = vmul.f32 %v608, %v608
    %v644 = vmul.f32 %v609, %v609
    %v645 = vmul.f32 %v610, %v610
    %v646 = vmul.f32 %v611, %v611
    %v647 = vmul.f32 %v612, %v612
    %v648 = vmul.f32 %v613, %v613
    %v649 = vmul.f32 %v614, %v614
    %v650 = vmul.f32 %v615, %v615
    %v651 = vmul.f32 %v616, %v616
    %v652 = vmul.f32 %v617, %v617
    %v653 = vmul.f32 %v618, %v618
    %654 = vadd.xlane.f32.xlu0 %v638
    %v655 = vpop.xlane.xlu0 %654
    %656 = vadd.xlane.f32.xlu0 %v639
    %v657 = vpop.xlane.xlu0 %656
    %658 = vadd.xlane.f32.xlu0 %v640
    %v659 = vpop.xlane.xlu0 %658
    %660 = vadd.xlane.f32.xlu0 %v641
    %v661 = vpop.xlane.xlu0 %660
    %662 = vadd.xlane.f32.xlu0 %v642
    %v663 = vpop.xlane.xlu0 %662
    %664 = vadd.xlane.f32.xlu0 %v643
    %v665 = vpop.xlane.xlu0 %664
    %666 = vadd.xlane.f32.xlu0 %v644
    %v667 = vpop.xlane.xlu0 %666
    %668 = vadd.xlane.f32.xlu0 %v645
    %v669 = vpop.xlane.xlu0 %668
    %670 = vadd.xlane.f32.xlu0 %v646
    %v671 = vpop.xlane.xlu0 %670
    %672 = vadd.xlane.f32.xlu0 %v647
    %v673 = vpop.xlane.xlu0 %672
    %674 = vadd.xlane.f32.xlu0 %v648
    %v675 = vpop.xlane.xlu0 %674
    %676 = vadd.xlane.f32.xlu0 %v649
    %v677 = vpop.xlane.xlu0 %676
    %678 = vadd.xlane.f32.xlu0 %v650
    %v679 = vpop.xlane.xlu0 %678
    %680 = vadd.xlane.f32.xlu0 %v651
    %v681 = vpop.xlane.xlu0 %680
    %682 = vadd.xlane.f32.xlu0 %v652
    %v683 = vpop.xlane.xlu0 %682
    %684 = vadd.xlane.f32.xlu0 %v653
    %v685 = vpop.xlane.xlu0 %684
    %686 = vmatprep.subr.mxu0 0.0
    %687 = vmatpush1.xpose.msra.mxu0 %v603
    %688 = vmatprep.subr.mxu0 0.0
    %689 = vmatpush1.xpose.msra.mxu0 %v604
    %690 = vmatprep.subr.mxu0 0.0
    %691 = vmatpush1.xpose.msra.mxu0 %v605
    %692 = vmatprep.subr.mxu0 0.0
    %693 = vmatpush1.xpose.msra.mxu0 %v606
    %694 = vmatprep.subr.mxu0 0.0
    %695 = vmatpush1.xpose.msra.mxu0 %v607
    %696 = vmatprep.subr.mxu0 0.0
    %697 = vmatpush1.xpose.msra.mxu0 %v608
    %698 = vmatprep.subr.mxu0 0.0
    %699 = vmatpush1.xpose.msra.mxu0 %v609
    %700 = vmatprep.subr.mxu0 0.0
    %701 = vmatpush1.xpose.msra.mxu0 %v610
    %702 = vmatprep.subr.mxu0 0.0
    %703 = vmatpush1.xpose.msra.mxu0 %v611
    %704 = vmatprep.subr.mxu0 0.0
    %705 = vmatpush1.xpose.msra.mxu0 %v612
    %706 = vmatprep.subr.mxu0 0.0
    %707 = vmatpush1.xpose.msra.mxu0 %v613
    %708 = vmatprep.subr.mxu0 0.0
    %709 = vmatpush1.xpose.msra.mxu0 %v614
    %710 = vmatprep.subr.mxu0 0.0
    %711 = vmatpush1.xpose.msra.mxu0 %v615
    %712 = vmatprep.subr.mxu0 0.0
    %713 = vmatpush1.xpose.msra.mxu0 %v616
    %714 = vmatprep.subr.mxu0 0.0
    %715 = vmatpush1.xpose.msra.mxu0 %v617
    %716 = vmatprep.subr.mxu0 0.0
    %717 = vmatpush1.xpose.msra.mxu0 %v618
    %718 = vmatprep.subr.mxu0 0.0
    %719 = vmatpush1.xpose.msra.mxu0 0.0
    %720 = vmatprep.subr.mxu0 0.0
    %721 = vmatpush1.xpose.msra.mxu0 0.0
    %722 = vmatprep.subr.mxu0 0.0
    %723 = vmatpush1.xpose.msra.mxu0 0.0
    %724 = vmatprep.subr.mxu0 0.0
    %725 = vmatpush1.xpose.msra.mxu0 0.0
    %726 = vmatprep.subr.mxu0 0.0
    %727 = vmatpush1.xpose.msra.mxu0 0.0
    %728 = vmatprep.subr.mxu0 0.0
    %729 = vmatpush1.xpose.msra.mxu0 0.0
    %730 = vmatprep.subr.mxu0 0.0
    %731 = vmatpush1.xpose.msra.mxu0 0.0
    %732 = vmatprep.subr.mxu0 0.0
    %733 = vmatpush1.xpose.msra.mxu0 0.0
    %734 = vmatprep.subr.mxu0 0.0
    %735 = vmatpush1.xpose.msra.mxu0 0.0
    %736 = vmatprep.subr.mxu0 0.0
    %737 = vmatpush1.xpose.msra.mxu0 0.0
    %738 = vmatprep.subr.mxu0 0.0
    %739 = vmatpush1.xpose.msra.mxu0 0.0
    %740 = vmatprep.subr.mxu0 0.0
    %741 = vmatpush1.xpose.msra.mxu0 0.0
    %742 = vmatprep.subr.mxu0 0.0
    %743 = vmatpush1.xpose.msra.mxu0 0.0
    %744 = vmatprep.subr.mxu0 0.0
    %745 = vmatpush1.xpose.msra.mxu0 0.0
    %746 = vmatprep.subr.mxu0 0.0
    %747 = vmatpush1.xpose.msra.mxu0 0.0
    %748 = vmatprep.subr.mxu0 0.0
    %749 = vmatpush1.xpose.msra.mxu0 0.0
    %750 = vmatprep.mubr.f32.mxu0 0.0
    %751 = vmatmul.mubr.f32.gmra.mrb[0].mxu0 %v238
    %v752 = vpop.f32.mrb[0].mxu0
    %v753 = vadd.f32 0.0, %v752
    %v754 = vpop.f32.mrb[0].mxu0
    %755 = vdwg.mxu0
    %v772 = vlaneseq
    %v773 = vand.u32 %v772, 127
    %v774 = vlaneseq
    %v775 = vshrl.u32 %v774, 7
    %v776 = vsub.s32 %v773, %v775
    %v777 = vrot.slane %v655, %v776
    %v778 = vadd.s32 %v773, 4294967288
    %v779 = vlaneseq
    %v780 = vshrl.u32 %v779, 7
    %v781 = vsub.s32 %v778, %v780
    %v782 = vrot.slane %v657, %v781
    %vm783 = vcmask 130112
    %v784 = vsel %vm783, %v782, %v777
    %v785 = vadd.s32 %v773, 4294967280
    %v786 = vlaneseq
    %v787 = vshrl.u32 %v786, 7
    %v788 = vsub.s32 %v785, %v787
    %v789 = vrot.slane %v659, %v788
    %vm790 = vcmask 195712
    %v791 = vsel %vm790, %v789, %v784
    %v792 = vadd.s32 %v773, 4294967272
    %v793 = vlaneseq
    %v794 = vshrl.u32 %v793, 7
    %v795 = vsub.s32 %v792, %v794
    %v796 = vrot.slane %v661, %v795
    %vm797 = vcmask 261312
    %v798 = vsel %vm797, %v796, %v791
    %v799 = vadd.s32 %v773, 4294967264
    %v800 = vlaneseq
    %v801 = vshrl.u32 %v800, 7
    %v802 = vsub.s32 %v799, %v801
    %v803 = vrot.slane %v663, %v802
    %vm804 = vcmask 326912
    %v805 = vsel %vm804, %v803, %v798
    %v806 = vadd.s32 %v773, 4294967256
    %v807 = vlaneseq
    %v808 = vshrl.u32 %v807, 7
    %v809 = vsub.s32 %v806, %v808
    %v810 = vrot.slane %v665, %v809
    %vm811 = vcmask 392512
    %v812 = vsel %vm811, %v810, %v805
    %v813 = vadd.s32 %v773, 4294967248
    %v814 = vlaneseq
    %v815 = vshrl.u32 %v814, 7
    %v816 = vsub.s32 %v813, %v815
    %v817 = vrot.slane %v667, %v816
    %vm818 = vcmask 458112
    %v819 = vsel %vm818, %v817, %v812
    %v820 = vadd.s32 %v773, 4294967240
    %v821 = vlaneseq
    %v822 = vshrl.u32 %v821, 7
    %v823 = vsub.s32 %v820, %v822
    %v824 = vrot.slane %v669, %v823
    %vm825 = vcmask 523712
    %v826 = vsel %vm825, %v824, %v819
    %v827 = vadd.s32 %v773, 4294967232
    %v828 = vlaneseq
    %v829 = vshrl.u32 %v828, 7
    %v830 = vsub.s32 %v827, %v829
    %v831 = vrot.slane %v671, %v830
    %vm832 = vcmask 589312
    %v833 = vsel %vm832, %v831, %v826
    %v834 = vadd.s32 %v773, 4294967224
    %v835 = vlaneseq
    %v836 = vshrl.u32 %v835, 7
    %v837 = vsub.s32 %v834, %v836
    %v838 = vrot.slane %v673, %v837
    %vm839 = vcmask 654912
    %v840 = vsel %vm839, %v838, %v833
    %v841 = vadd.s32 %v773, 4294967216
    %v842 = vlaneseq
    %v843 = vshrl.u32 %v842, 7
    %v844 = vsub.s32 %v841, %v843
    %v845 = vrot.slane %v675, %v844
    %vm846 = vcmask 720512
    %v847 = vsel %vm846, %v845, %v840
    %v848 = vadd.s32 %v773, 4294967208
    %v849 = vlaneseq
    %v850 = vshrl.u32 %v849, 7
    %v851 = vsub.s32 %v848, %v850
    %v852 = vrot.slane %v677, %v851
    %vm853 = vcmask 786112
    %v854 = vsel %vm853, %v852, %v847
    %v855 = vadd.s32 %v773, 4294967200
    %v856 = vlaneseq
    %v857 = vshrl.u32 %v856, 7
    %v858 = vsub.s32 %v855, %v857
    %v859 = vrot.slane %v679, %v858
    %vm860 = vcmask 851712
    %v861 = vsel %vm860, %v859, %v854
    %v862 = vadd.s32 %v773, 4294967192
    %v863 = vlaneseq
    %v864 = vshrl.u32 %v863, 7
    %v865 = vsub.s32 %v862, %v864
    %v866 = vrot.slane %v681, %v865
    %vm867 = vcmask 917312
    %v868 = vsel %vm867, %v866, %v861
    %v869 = vadd.s32 %v773, 4294967184
    %v870 = vlaneseq
    %v871 = vshrl.u32 %v870, 7
    %v872 = vsub.s32 %v869, %v871
    %v873 = vrot.slane %v683, %v872
    %vm874 = vcmask 982912
    %v875 = vsel %vm874, %v873, %v868
    %v876 = vadd.s32 %v773, 4294967176
    %v877 = vlaneseq
    %v878 = vshrl.u32 %v877, 7
    %v879 = vsub.s32 %v876, %v878
    %v880 = vrot.slane %v685, %v879
    %vm881 = vcmask 1048512
    %v882 = vsel %vm881, %v880, %v875
    %vm883 = vcmask 1042434
    %v884 = vsel %vm883, %v882, %v882
    %vm885 = vcmask 1043459
    %v886 = vsel %vm885, %v882, %v884
    %vm887 = vcmask 1044484
    %v888 = vsel %vm887, %v882, %v886
    %vm889 = vcmask 1045509
    %v890 = vsel %vm889, %v882, %v888
    %vm891 = vcmask 1046534
    %v892 = vsel %vm891, %v882, %v890
    %vm893 = vcmask 1047559
    %v894 = vsel %vm893, %v882, %v892
    %v896 = vadd.f32 %v637, %v894
    %v897 = vmul.f32 %v753, 2.0
    %v898 = vsub.f32 %v896, %v897
    %v899 = vmax.f32 %v898, 0.0
    %v900 = vsub.f32 0.0, %v899
    %901 = vst [vmem:[#allocation6] sm:$0xff] %v900
    // Predicated region
    $region26: #{tpu_custom_call.1} parent=1 // pred_check
      _
    $region27: #{tpu_custom_call.1} parent=1 // pred_check_branch
      %903 = sbr.rel (0) target = $region29
    $region28: #{tpu_custom_call.1} parent=1 // pred_region
      %s905 = ssub.s32 256, 256
      %906 = vsyncadd [#allocation3], %s905
      %s907 = sshll.u32 [#allocation2], 4
      %s908 = int_to_ptr.vmem [resolvable:$true] %s907
      %913 = dma.vmem_to_hbm [thread:$0]  %s908, 256, %s6, [#allocation3], 128, 128, 8
    $region29: #{tpu_custom_call.1} parent=1 // pred_fallthru
      _
    // Predicated region
    $region30: #{tpu_custom_call.1} parent=1 // pred_check
      _
    $region31: #{tpu_custom_call.1} parent=1 // pred_check_branch
      %915 = sbr.rel (0) target = $region33
    $region32: #{tpu_custom_call.1} parent=1 // pred_region
      %s917 = ssub.s32 2048, 2048
      %918 = vsyncadd [#allocation5], %s917
      %s919 = sshll.u32 [#allocation4], 4
      %s920 = int_to_ptr.vmem [resolvable:$true] %s919
      %925 = dma.vmem_to_hbm [thread:$0]  %s920, 2048, %s7, [#allocation5], 128, 128, 8
    $region33: #{tpu_custom_call.1} parent=1 // pred_fallthru
      _
    // Predicated region
    $region34: #{tpu_custom_call.1} parent=1 // pred_check
      _
    $region35: #{tpu_custom_call.1} parent=1 // pred_check_branch
      %927 = sbr.rel (0) target = $region37
    $region36: #{tpu_custom_call.1} parent=1 // pred_region
      %s929 = ssub.s32 128, 128
      %930 = vsyncadd [#allocation5], %s929
      %s932 = sshll.u32 [#allocation6], 4
      %s933 = int_to_ptr.vmem [resolvable:$true] %s932
      %935 = dma.vmem_to_hbm [thread:$0]  %s933, 128, %s8, [#allocation5]
    $region37: #{tpu_custom_call.1} parent=1 // pred_fallthru
      _
    // Predicated region
    $region38: #{tpu_custom_call.1} parent=1 // pred_check
      _
    $region39: #{tpu_custom_call.1} parent=1 // pred_check_branch
      %937 = sbr.rel (0) target = $region41
    $region40: #{tpu_custom_call.1} parent=1 // pred_region
      %938 = dma.done [#allocation3], 256
    $region41: #{tpu_custom_call.1} parent=1 // pred_fallthru
      _
    // Predicated region
    $region42: #{tpu_custom_call.1} parent=1 // pred_check
      _
    $region43: #{tpu_custom_call.1} parent=1 // pred_check_branch
      %940 = sbr.rel (0) target = $region45
    $region44: #{tpu_custom_call.1} parent=1 // pred_region
      %941 = dma.done [#allocation5], 2048
    $region45: #{tpu_custom_call.1} parent=1 // pred_fallthru
      _
    // Predicated region
    $region46: #{tpu_custom_call.1} parent=1 // pred_check
      _
    $region47: #{tpu_custom_call.1} parent=1 // pred_check_branch
      %943 = sbr.rel (0) target = $region49
    $region48: #{tpu_custom_call.1} parent=1 // pred_region
      %944 = dma.done [#allocation5], 128
    $region49: #{tpu_custom_call.1} parent=1 // pred_fallthru
      _
    %945 = vsyncpa [#allocation3], 1
    %946 = vsyncpa [#allocation5], 1

</llo_original>
